<compile_context>
chip_gen: v7x
topology: tpu7x:2x2x1
jax: 0.10.0
libtpu: 0.0.40
codegen_flags: <defaults>
</compile_context>

<pallas_src>
import functools

import numpy as np
import jax
import jax.numpy as jnp
from jax.experimental import pallas as pl
from jax.experimental.pallas import tpu as pltpu

_BN_EPS = 1e-5                      # torch.nn.BatchNorm1d default eps
_VMEM_LIMIT = 48 * 1024 * 1024      # explicit scoped-VMEM budget (fits v5e/v6e/v7x)


def _round_up(x, m):
    return ((x + m - 1) // m) * m


def _vmem_spec():
    # Whole-array block resident in VMEM (block == full array satisfies the
    # (8,128)-or-full-dim constraint).
    return pl.BlockSpec(memory_space=pltpu.MemorySpace.VMEM)


def _simple_params():
    return pltpu.CompilerParams(vmem_limit_bytes=_VMEM_LIMIT)


# ============================ fused AE kernels ============================

def _lin_bn_relu_kernel(x_ref, w_ref, b_ref, g_ref, beta_ref, o_ref):
    # o = relu(BN(x @ W + b))  -- BatchNorm1d training-mode batch stats (biased var)
    y = jnp.dot(x_ref[...], w_ref[...], preferred_element_type=jnp.float32) + b_ref[...]
    mean = jnp.mean(y, axis=0, keepdims=True)
    var = jnp.mean(jnp.square(y - mean), axis=0, keepdims=True)
    yn = (y - mean) * jax.lax.rsqrt(var + _BN_EPS)
    o_ref[...] = jnp.maximum(yn * g_ref[...] + beta_ref[...], 0.0)


def pallas_linear_bn_relu(x, w, b, gamma, beta):
    # TODO(synk): batch stats are computed over the full (un-tiled) batch; a huge N
    # would need a two-pass / accumulator-over-row-tiles BN scheme.
    n, f = x.shape[0], w.shape[1]
    return pl.pallas_call(
        _lin_bn_relu_kernel,
        out_shape=jax.ShapeDtypeStruct((n, f), jnp.float32),
        in_specs=[_vmem_spec()] * 5,
        out_specs=_vmem_spec(),
        compiler_params=_simple_params(),
    )(x, w, b.reshape(1, -1), gamma.reshape(1, -1), beta.reshape(1, -1))


def _heads_kernel(n_out, x_ref, w_ref, b_ref, xbar_ref, mean_ref, disp_ref, pi_ref):
    # One wide matmul over the 4 concatenated heads; split + activate in-kernel.
    y = jnp.dot(x_ref[...], w_ref[...], preferred_element_type=jnp.float32) + b_ref[...]
    xbar_ref[...] = y[:, 0:n_out]                                   # identity head
    ym = y[:, n_out:2 * n_out]                                      # MeanAct
    mean_ref[...] = jnp.clip(jnp.exp(ym), 1e-5, 1e6)
    yd = y[:, 2 * n_out:3 * n_out]                                  # DispAct
    sp = jnp.maximum(yd, 0.0) + jnp.log1p(jnp.exp(-jnp.abs(yd)))    # stable softplus
    disp_ref[...] = jnp.clip(sp, 1e-4, 1e4)
    yp = y[:, 3 * n_out:4 * n_out]                                  # Sigmoid
    pi_ref[...] = 1.0 / (1.0 + jnp.exp(-yp))


def pallas_fused_heads(x, w_cat, b_cat, n_out):
    n = x.shape[0]
    out = jax.ShapeDtypeStruct((n, n_out), jnp.float32)
    return pl.pallas_call(
        functools.partial(_heads_kernel, n_out),
        out_shape=(out, out, out, out),
        in_specs=[_vmem_spec()] * 3,
        out_specs=(_vmem_spec(),) * 4,
        compiler_params=_simple_params(),
    )(x, w_cat, b_cat.reshape(1, -1))


def _z_q_kernel(v, x_ref, w_ref, b_ref, mut_ref, mu2_ref, z_ref, q_ref):
    # z = tra3 @ Wz + bz, then Student's-t soft assignment q while z is in VMEM.
    z = jnp.dot(x_ref[...], w_ref[...], preferred_element_type=jnp.float32) + b_ref[...]
    z_ref[...] = z
    z2 = jnp.sum(z * z, axis=1, keepdims=True)                                   # [N,1]
    cross = jnp.dot(z, mut_ref[...], preferred_element_type=jnp.float32)         # [N,K]
    d2 = jnp.maximum(z2 + mu2_ref[...] - 2.0 * cross, 0.0)   # clamp f32 cancellation
    q = 1.0 / (1.0 + d2 / v)
    if v != 1.0:                                             # skip pow for v == 1
        q = jnp.power(q, (v + 1.0) / 2.0)
    q_ref[...] = q / jnp.sum(q, axis=1, keepdims=True)


def pallas_z_and_q(x, w, b, cluster, v):
    n, n_z = x.shape[0], w.shape[1]
    k = cluster.shape[0]
    mut = cluster.T                                               # [n_z, K]  (param prep)
    mu2 = jnp.sum(cluster * cluster, axis=1).reshape(1, -1)       # [1, K]
    return pl.pallas_call(
        functools.partial(_z_q_kernel, float(v)),
        out_shape=(jax.ShapeDtypeStruct((n, n_z), jnp.float32),
                   jax.ShapeDtypeStruct((n, k), jnp.float32)),
        in_specs=[_vmem_spec()] * 5,
        out_specs=(_vmem_spec(), _vmem_spec()),
        compiler_params=_simple_params(),
    )(x, w, b.reshape(1, -1), mut, mu2)


# ============================ GCN kernels (tiled) ============================

def _support_kernel(x_ref, w_ref, o_ref):
    # S = x @ W  (row tile)
    o_ref[...] = jnp.dot(x_ref[...], w_ref[...],
                         preferred_element_type=jnp.float32).astype(o_ref.dtype)


def _support_mix_kernel(sigma, h_ref, t_ref, w_ref, o_ref):
    # S = ((1-sigma)*h + sigma*t) @ W  -- mix stays in f32 on the VPU (v5e-safe)
    xin = (1.0 - sigma) * h_ref[...] + sigma * t_ref[...]
    o_ref[...] = jnp.dot(xin, w_ref[...],
                         preferred_element_type=jnp.float32).astype(o_ref.dtype)


def _support_call(kernel, arrays, w, tr, out_dtype):
    n_pad, f_in = arrays[0].shape
    f_out = w.shape[1]
    grid = (n_pad // tr,)
    in_specs = [pl.BlockSpec((tr, f_in), lambda r: (r, 0)) for _ in arrays]
    in_specs.append(pl.BlockSpec((f_in, f_out), lambda r: (0, 0)))    # W resident
    return pl.pallas_call(
        kernel,
        out_shape=jax.ShapeDtypeStruct((n_pad, f_out), out_dtype),
        grid_spec=pltpu.PrefetchScalarGridSpec(
            num_scalar_prefetch=0, grid=grid,
            in_specs=in_specs,
            out_specs=pl.BlockSpec((tr, f_out), lambda r: (r, 0))),
        compiler_params=pltpu.CompilerParams(
            dimension_semantics=("parallel",),
            vmem_limit_bytes=_VMEM_LIMIT),
    )(*arrays, w)


def pallas_gcn_support(x_p, w, *, tr, out_dtype=jnp.float32):
    return _support_call(_support_kernel, (x_p,), w, tr, out_dtype)


def pallas_gcn_support_mix(h_p, t_p, w, sigma, *, tr, out_dtype=jnp.float32):
    return _support_call(functools.partial(_support_mix_kernel, float(sigma)),
                         (h_p, t_p), w, tr, out_dtype)


def _adj_agg_kernel(adj_ref, s_ref, b_ref, o_ref, acc_ref):
    # out[i] = sum_k adj[i,k] @ S[k] + b ; reduction axis k is last in the grid.
    k = pl.program_id(1)

    @pl.when(k == 0)
    def _():
        acc_ref[...] = jnp.zeros_like(acc_ref)

    acc_ref[...] += jnp.dot(adj_ref[...], s_ref[...],
                            preferred_element_type=jnp.float32)

    @pl.when(k == pl.num_programs(1) - 1)
    def _():
        o_ref[...] = acc_ref[...] + b_ref[...]          # bias added once per row tile


def _adj_agg_softmax_kernel(adj_ref, s_ref, b_ref, h_ref, p_ref, acc_ref):
    # Same as above, with the row-wise softmax of the final GCN layer fused in.
    k = pl.program_id(1)

    @pl.when(k == 0)
    def _():
        acc_ref[...] = jnp.zeros_like(acc_ref)

    acc_ref[...] += jnp.dot(adj_ref[...], s_ref[...],
                            preferred_element_type=jnp.float32)

    @pl.when(k == pl.num_programs(1) - 1)
    def _():
        h = acc_ref[...] + b_ref[...]
        h_ref[...] = h
        m = jnp.max(h, axis=1, keepdims=True)
        e = jnp.exp(h - m)
        p_ref[...] = e / jnp.sum(e, axis=1, keepdims=True)


def pallas_adj_aggregate(adj_p, s, b, *, tm, tk, with_softmax=False):
    n_pad = adj_p.shape[0]
    f_out = s.shape[1]
    grid = (n_pad // tm, n_pad // tk)
    in_specs = [
        pl.BlockSpec((tm, tk), lambda i, k: (i, k)),       # adj row/col tile
        pl.BlockSpec((tk, f_out), lambda i, k: (k, 0)),    # support k-tile
        pl.BlockSpec((1, f_out), lambda i, k: (0, 0)),     # bias (resident)
    ]
    out_block = pl.BlockSpec((tm, f_out), lambda i, k: (i, 0))

    flops = 2 * n_pad * n_pad * f_out
    bytes_accessed = (n_pad * n_pad * adj_p.dtype.itemsize
                      + n_pad * f_out * s.dtype.itemsize
                      + n_pad * f_out * 4 + f_out * 4)
    if with_softmax:
        kernel = _adj_agg_softmax_kernel
        out_shape = (jax.ShapeDtypeStruct((n_pad, f_out), jnp.float32),
                     jax.ShapeDtypeStruct((n_pad, f_out), jnp.float32))
        out_specs = (out_block, out_block)
        transcend = n_pad * f_out
        bytes_accessed += n_pad * f_out * 4
    else:
        kernel = _adj_agg_kernel
        out_shape = jax.ShapeDtypeStruct((n_pad, f_out), jnp.float32)
        out_specs = out_block
        transcend = 0

    return pl.pallas_call(
        kernel,
        out_shape=out_shape,
        grid_spec=pltpu.PrefetchScalarGridSpec(
            num_scalar_prefetch=0, grid=grid,
            in_specs=in_specs, out_specs=out_specs,
            scratch_shapes=[pltpu.VMEM((tm, f_out), jnp.float32)]),
        compiler_params=pltpu.CompilerParams(
            dimension_semantics=("parallel", "arbitrary"),   # row tiles across TCs (v7x)
            vmem_limit_bytes=_VMEM_LIMIT),
        cost_estimate=pl.CostEstimate(flops=int(flops), transcendentals=int(transcend),
                                      bytes_accessed=int(bytes_accessed)),
    )(adj_p, s, b.reshape(1, -1))


# ============================ padding / tiling helpers ============================

def _gcn_tiling(n, tile):
    # adj blocks are (tm, tk); tk is the lane axis so tile must be a 128 multiple
    # (or equal the full padded dim when the whole graph fits in one tile).
    assert tile % 128 == 0
    if n <= tile:
        n_pad = _round_up(n, 8)
        return n_pad, n_pad, n_pad
    n_pad = _round_up(n, tile)
    return n_pad, tile, tile


def _pad_rows(a, n_pad):
    n = a.shape[0]
    if n == n_pad:
        return a
    return jnp.pad(a, ((0, n_pad - n), (0, 0)))


def _pad_adj(adj, n_pad):
    n = adj.shape[0]
    if n == n_pad:
        return adj
    return jnp.pad(adj, ((0, n_pad - n), (0, n_pad - n)))


# ============================ parameter init (deterministic, synthetic) ============================
# TODO(synk): the torch module loads a pretrained AE checkpoint ('model/Zeisel.pkl');
# parameters are initialized synthetically here.

def _linear_init(key, f_in, f_out):
    k1, k2 = jax.random.split(key)
    bound = 1.0 / np.sqrt(f_in)
    w = jax.random.uniform(k1, (f_in, f_out), jnp.float32, -bound, bound)
    b = jax.random.uniform(k2, (f_out,), jnp.float32, -bound, bound)
    return w, b


def _gcn_init(key, f_in, f_out):
    bound = np.sqrt(6.0 / f_in)  # kaiming_uniform-like
    w = jax.random.uniform(key, (f_in, f_out), jnp.float32, -bound, bound)
    b = jnp.zeros((f_out,), jnp.float32)
    return w, b


def _bn_init(f):
    return jnp.ones((f,), jnp.float32), jnp.zeros((f,), jnp.float32)


def init_sdcn_params(key, n_enc_1, n_enc_2, n_enc_3, n_dec_1, n_dec_2, n_dec_3,
                     n_input, n_z, n_clusters):
    ks = jax.random.split(key, 20)
    p = {}
    p["enc_1"] = _linear_init(ks[0], n_input, n_enc_1);  p["BN1"] = _bn_init(n_enc_1)
    p["enc_2"] = _linear_init(ks[1], n_enc_1, n_enc_2);  p["BN2"] = _bn_init(n_enc_2)
    p["enc_3"] = _linear_init(ks[2], n_enc_2, n_enc_3);  p["BN3"] = _bn_init(n_enc_3)
    p["z_layer"] = _linear_init(ks[3], n_enc_3, n_z)
    p["dec_1"] = _linear_init(ks[4], n_z, n_dec_1);      p["BN4"] = _bn_init(n_dec_1)
    p["dec_2"] = _linear_init(ks[5], n_dec_1, n_dec_2);  p["BN5"] = _bn_init(n_dec_2)
    p["dec_3"] = _linear_init(ks[6], n_dec_2, n_dec_3);  p["BN6"] = _bn_init(n_dec_3)
    p["x_bar_layer"] = _linear_init(ks[7], n_dec_3, n_input)
    p["gnn_1"] = _gcn_init(ks[8], n_input, n_enc_1)
    p["gnn_2"] = _gcn_init(ks[9], n_enc_1, n_enc_2)
    p["gnn_3"] = _gcn_init(ks[10], n_enc_2, n_enc_3)
    p["gnn_4"] = _gcn_init(ks[11], n_enc_3, n_z)
    p["gnn_5"] = _gcn_init(ks[12], n_z, n_clusters)
    p["dec_mean"] = _linear_init(ks[13], n_dec_3, n_input)
    p["dec_disp"] = _linear_init(ks[14], n_dec_3, n_input)
    p["dec_pi"] = _linear_init(ks[15], n_dec_3, n_input)
    xavier_std = np.sqrt(2.0 / (n_clusters + n_z))
    p["cluster"] = jax.random.normal(ks[16], (n_clusters, n_z), jnp.float32) * xavier_std
    return p


# ============================ SDCN forward (Pallas) ============================

def sdcn_forward(params, x, adj, v=1.0, sigma=0.5, gcn_tile=512, adj_bf16=False):
    """Forward pass matching SDCN.forward (sans the returned ZINBLoss module)."""
    n = x.shape[0]

    # ---- AE branch: fused Linear+BN+ReLU blocks ----
    tra1 = pallas_linear_bn_relu(x,    *params["enc_1"], *params["BN1"])
    tra2 = pallas_linear_bn_relu(tra1, *params["enc_2"], *params["BN2"])
    tra3 = pallas_linear_bn_relu(tra2, *params["enc_3"], *params["BN3"])

    # z-layer + Student's-t q fused in one kernel (z is resident in VMEM for q).
    z, q = pallas_z_and_q(tra3, *params["z_layer"], params["cluster"], v)

    dec_h1 = pallas_linear_bn_relu(z,      *params["dec_1"], *params["BN4"])
    dec_h2 = pallas_linear_bn_relu(dec_h1, *params["dec_2"], *params["BN5"])
    dec_h3 = pallas_linear_bn_relu(dec_h2, *params["dec_3"], *params["BN6"])

    # Four heads on dec_h3 fused into one wide (lane-dense) matmul.
    w_cat = jnp.concatenate([params["x_bar_layer"][0], params["dec_mean"][0],
                             params["dec_disp"][0], params["dec_pi"][0]], axis=1)
    b_cat = jnp.concatenate([params["x_bar_layer"][1], params["dec_mean"][1],
                             params["dec_disp"][1], params["dec_pi"][1]], axis=0)
    x_bar, _mean, _disp, _pi = pallas_fused_heads(
        dec_h3, w_cat, b_cat, n_out=params["x_bar_layer"][0].shape[1])

    # ---- GCN branch (node dimension padded + tiled) ----
    n_pad, tm, tk = _gcn_tiling(n, gcn_tile)
    adj_p = _pad_adj(adj, n_pad)
    if adj_bf16:
        # Optional: halves adj HBM traffic and doubles MXU throughput on v6e/v7x.
        adj_p = adj_p.astype(jnp.bfloat16)
    s_dtype = jnp.bfloat16 if adj_bf16 else jnp.float32

    x_p = _pad_rows(x, n_pad)
    t1_p = _pad_rows(tra1, n_pad)
    t2_p = _pad_rows(tra2, n_pad)
    t3_p = _pad_rows(tra3, n_pad)
    z_p = _pad_rows(z, n_pad)

    s = pallas_gcn_support(x_p, params["gnn_1"][0], tr=tm, out_dtype=s_dtype)
    h = pallas_adj_aggregate(adj_p, s, params["gnn_1"][1], tm=tm, tk=tk)

    s = pallas_gcn_support_mix(h, t1_p, params["gnn_2"][0], sigma, tr=tm, out_dtype=s_dtype)
    h = pallas_adj_aggregate(adj_p, s, params["gnn_2"][1], tm=tm, tk=tk)

    s = pallas_gcn_support_mix(h, t2_p, params["gnn_3"][0], sigma, tr=tm, out_dtype=s_dtype)
    h = pallas_adj_aggregate(adj_p, s, params["gnn_3"][1], tm=tm, tk=tk)

    s = pallas_gcn_support_mix(h, t3_p, params["gnn_4"][0], sigma, tr=tm, out_dtype=s_dtype)
    h = pallas_adj_aggregate(adj_p, s, params["gnn_4"][1], tm=tm, tk=tk)

    s = pallas_gcn_support_mix(h, z_p, params["gnn_5"][0], sigma, tr=tm, out_dtype=s_dtype)
    h_pad, predict_pad = pallas_adj_aggregate(adj_p, s, params["gnn_5"][1],
                                              tm=tm, tk=tk, with_softmax=True)
    h = h_pad[:n]
    predict = predict_pad[:n]

    # TODO(synk): torch forward also returns the ZINBLoss *module* (not a value); omitted.
    return x_bar, q, predict, h, _mean, _disp, _pi


# ============================ pure-JAX reference for validation ============================

def reference_forward(params, x, adj, v=1.0):
    def lin(a, w, b):
        return a @ w + b

    def bnrelu(y, g, bta):
        m = jnp.mean(y, axis=0, keepdims=True)
        va = jnp.mean((y - m) ** 2, axis=0, keepdims=True)
        return jnp.maximum((y - m) / jnp.sqrt(va + _BN_EPS) * g + bta, 0.0)

    def gcn(a, w, b):
        return adj @ (a @ w) + b

    tra1 = bnrelu(lin(x, *params["enc_1"]), *params["BN1"])
    tra2 = bnrelu(lin(tra1, *params["enc_2"]), *params["BN2"])
    tra3 = bnrelu(lin(tra2, *params["enc_3"]), *params["BN3"])
    z = lin(tra3, *params["z_layer"])
    d1 = bnrelu(lin(z, *params["dec_1"]), *params["BN4"])
    d2 = bnrelu(lin(d1, *params["dec_2"]), *params["BN5"])
    d3 = bnrelu(lin(d2, *params["dec_3"]), *params["BN6"])
    x_bar = lin(d3, *params["x_bar_layer"])

    sigma = 0.5
    h = gcn(x, *params["gnn_1"])
    h = gcn((1 - sigma) * h + sigma * tra1, *params["gnn_2"])
    h = gcn((1 - sigma) * h + sigma * tra2, *params["gnn_3"])
    h = gcn((1 - sigma) * h + sigma * tra3, *params["gnn_4"])
    h = gcn((1 - sigma) * h + sigma * z, *params["gnn_5"])
    predict = jax.nn.softmax(h, axis=1)

    _mean = jnp.clip(jnp.exp(lin(d3, *params["dec_mean"])), 1e-5, 1e6)
    _disp = jnp.clip(jax.nn.softplus(lin(d3, *params["dec_disp"])), 1e-4, 1e4)
    _pi = jax.nn.sigmoid(lin(d3, *params["dec_pi"]))

    mu = params["cluster"]
    d2q = jnp.sum((z[:, None, :] - mu[None, :, :]) ** 2, axis=2)
    qq = 1.0 / (1.0 + d2q / v)
    qq = qq ** ((v + 1.0) / 2.0)
    qq = qq / jnp.sum(qq, axis=1, keepdims=True)
    return x_bar, qq, predict, h, _mean, _disp, _pi


# ============================ main ============================

if __name__ == "__main__":
    # Small but representative shapes; N chosen so that with gcn_tile=128 the
    # tiled adj-aggregation path (grid reduction + accumulator) is exercised.
    N = 160                       # number of graph nodes (batch)
    n_input = 64
    n_enc_1, n_enc_2, n_enc_3 = 128, 128, 32
    n_dec_1, n_dec_2, n_dec_3 = 32, 128, 128
    n_z, n_clusters = 16, 8
    v = 1.0

    key = jax.random.PRNGKey(0)
    kp, kx, ka = jax.random.split(key, 3)
    params = init_sdcn_params(kp, n_enc_1, n_enc_2, n_enc_3,
                              n_dec_1, n_dec_2, n_dec_3,
                              n_input, n_z, n_clusters)

    x = jax.random.normal(kx, (N, n_input), jnp.float32)
    a = jax.random.uniform(ka, (N, N), jnp.float32)
    adj = a / jnp.sum(a, axis=1, keepdims=True)     # dense row-normalized adjacency

    outs = sdcn_forward(params, x, adj, v=v, gcn_tile=128)
    outs = jax.block_until_ready(outs)

    refs = reference_forward(params, x, adj, v=v)
    names = ["x_bar", "q", "predict", "h", "_mean", "_disp", "_pi"]
    for name, o, r in zip(names, outs, refs):
        o_np, r_np = np.asarray(o), np.asarray(r)
        assert o_np.shape == r_np.shape, (name, o_np.shape, r_np.shape)
        assert np.all(np.isfinite(o_np)), name
        np.testing.assert_allclose(o_np, r_np, rtol=2e-2, atol=2e-3, err_msg=name)
    # sanity: row-stochastic outputs
    np.testing.assert_allclose(np.asarray(outs[1]).sum(axis=1), 1.0, atol=1e-5)
    np.testing.assert_allclose(np.asarray(outs[2]).sum(axis=1), 1.0, atol=1e-5)

    print("KERNEL_OK")
</pallas_src>

<mosaic_0001>
module attributes {stable_mosaic.version = 11 : i64} {
  func.func @_lin_bn_relu_kernel(%arg0: memref<160x64xf32, #tpu.memory_space<vmem>>, %arg1: memref<64x128xf32, #tpu.memory_space<vmem>>, %arg2: memref<1x128xf32, #tpu.memory_space<vmem>>, %arg3: memref<1x128xf32, #tpu.memory_space<vmem>>, %arg4: memref<1x128xf32, #tpu.memory_space<vmem>>, %arg5: memref<160x128xf32, #tpu.memory_space<vmem>>) attributes {dimension_semantics = [], scalar_prefetch = 0 : i64, scratch_operands = 0 : i64, tpu.core_type = #tpu.core_type<tc>} {
    %c0 = arith.constant 0 : index
    %c0_0 = arith.constant 0 : index
    %0 = vector.load %arg0[%c0, %c0_0] : memref<160x64xf32, #tpu.memory_space<vmem>>, vector<160x64xf32>
    %c0_1 = arith.constant 0 : index
    %c0_2 = arith.constant 0 : index
    %1 = vector.load %arg1[%c0_1, %c0_2] : memref<64x128xf32, #tpu.memory_space<vmem>>, vector<64x128xf32>
    %cst = arith.constant dense<0.000000e+00> : vector<160x128xf32>
    %2 = tpu.matmul %0, %1, %cst {dimension_numbers = #tpu.dot_dimension_numbers<[1], [0], [0], [1], [0, 0, 1, 1], [], []>} : vector<160x64xf32>, vector<64x128xf32>, vector<160x128xf32> -> vector<160x128xf32>
    %c0_3 = arith.constant 0 : index
    %c0_4 = arith.constant 0 : index
    %3 = vector.load %arg2[%c0_3, %c0_4] : memref<1x128xf32, #tpu.memory_space<vmem>>, vector<1x128xf32>
    %4 = vector.broadcast %3 : vector<1x128xf32> to vector<160x128xf32>
    %5 = arith.addf %2, %4 : vector<160x128xf32>
    %cst_5 = arith.constant dense<0.000000e+00> : vector<128xf32>
    %6 = vector.multi_reduction <add>, %5, %cst_5 [0] : vector<160x128xf32> to vector<128xf32>
    %7 = vector.shape_cast %6 : vector<128xf32> to vector<1x128xf32>
    %cst_6 = arith.constant 1.600000e+02 : f32
    %8 = vector.broadcast %cst_6 : f32 to vector<1x128xf32>
    %9 = arith.divf %7, %8 : vector<1x128xf32>
    %10 = vector.broadcast %9 : vector<1x128xf32> to vector<160x128xf32>
    %11 = arith.subf %5, %10 : vector<160x128xf32>
    %12 = arith.mulf %11, %11 : vector<160x128xf32>
    %cst_7 = arith.constant dense<0.000000e+00> : vector<128xf32>
    %13 = vector.multi_reduction <add>, %12, %cst_7 [0] : vector<160x128xf32> to vector<128xf32>
    %14 = vector.shape_cast %13 : vector<128xf32> to vector<1x128xf32>
    %cst_8 = arith.constant 1.600000e+02 : f32
    %15 = vector.broadcast %cst_8 : f32 to vector<1x128xf32>
    %16 = arith.divf %14, %15 : vector<1x128xf32>
    %17 = vector.broadcast %9 : vector<1x128xf32> to vector<160x128xf32>
    %18 = arith.subf %5, %17 : vector<160x128xf32>
    %cst_9 = arith.constant 9.99999974E-6 : f32
    %19 = vector.broadcast %cst_9 : f32 to vector<1x128xf32>
    %20 = arith.addf %16, %19 : vector<1x128xf32>
    %21 = math.rsqrt %20 : vector<1x128xf32>
    %22 = vector.broadcast %21 : vector<1x128xf32> to vector<160x128xf32>
    %23 = arith.mulf %18, %22 : vector<160x128xf32>
    %c0_10 = arith.constant 0 : index
    %c0_11 = arith.constant 0 : index
    %24 = vector.load %arg3[%c0_10, %c0_11] : memref<1x128xf32, #tpu.memory_space<vmem>>, vector<1x128xf32>
    %25 = vector.broadcast %24 : vector<1x128xf32> to vector<160x128xf32>
    %26 = arith.mulf %23, %25 : vector<160x128xf32>
    %c0_12 = arith.constant 0 : index
    %c0_13 = arith.constant 0 : index
    %27 = vector.load %arg4[%c0_12, %c0_13] : memref<1x128xf32, #tpu.memory_space<vmem>>, vector<1x128xf32>
    %28 = vector.broadcast %27 : vector<1x128xf32> to vector<160x128xf32>
    %29 = arith.addf %26, %28 : vector<160x128xf32>
    %cst_14 = arith.constant 0.000000e+00 : f32
    %30 = vector.broadcast %cst_14 : f32 to vector<160x128xf32>
    %31 = arith.maximumf %29, %30 : vector<160x128xf32>
    %c0_15 = arith.constant 0 : index
    %c0_16 = arith.constant 0 : index
    %32 = vector.load %arg5[%c0_15, %c0_16] : memref<160x128xf32, #tpu.memory_space<vmem>>, vector<160x128xf32>
    tpu.vector_store %arg5[%c0_15, %c0_16], %31 {strides = array<i32>} : memref<160x128xf32, #tpu.memory_space<vmem>>, vector<160x128xf32>,
    return
  }
}

</mosaic_0001>

<llo_original>
// kernel: tpu_custom_call.1
$region0: #{tpu_custom_call.1}
  #allocation0 [shape = 'u32[]', space=smem, size = 0x4, offset = 0x4, fixed_abs, tag = 'smem constant byte address 0x4 - core index']
  #allocation1 [shape = 'u32[144,128]{1,0:T(1,128)}', space=vmem, size = 0x12000, scoped, tag = 'internal scratch']
  %s0 = inlined_call_operand.vmem [shape: f32[160,64], index: 0, kind: input, shape index: {}]
  %s1 = inlined_call_operand.vmem [shape: f32[64,128], index: 1, kind: input, shape index: {}]
  %s2 = inlined_call_operand.vmem [shape: f32[1,128], index: 2, kind: input, shape index: {}]
  %s3 = inlined_call_operand.vmem [shape: f32[1,128], index: 3, kind: input, shape index: {}]
  %s4 = inlined_call_operand.vmem [shape: f32[1,128], index: 4, kind: input, shape index: {}]
  %s5 = inlined_call_operand.hbm [shape: f32[160,128], index: 5, kind: output, shape index: {}]
  %s6 = sld [smem:[#allocation0]]
  $region30: #{tpu_custom_call.1} parent=0
    _
  %s8 = ssub.s32 1, %s6
  %s9 = scalar_select 0, %s8, %s6
  $region1: #{tpu_custom_call.1} parent=0
    #allocation2 [shape = 'u8[81920]{0}', space=vmem, size = 0x14000, scoped, tag = 'output window, operand 0, single buffered']
    #allocation3 [shape = 's32[1]{0}', space=sflag, size = 0x4, scoped, tag = 'scoped memory for tpu_custom_call.1']
    %10 = vsyncpa [#allocation3], 0
    // Predicated region
    $region2: #{tpu_custom_call.1} parent=1 // pred_check
      _
    $region3: #{tpu_custom_call.1} parent=1 // pred_check_branch
      %12 = sbr.rel (0) target = $region5
    $region4: #{tpu_custom_call.1} parent=1 // pred_region
      _
    $region5: #{tpu_custom_call.1} parent=1 // pred_fallthru
      _
    // Predicated region
    $region6: #{tpu_custom_call.1} parent=1 // pred_check
      _
    $region7: #{tpu_custom_call.1} parent=1 // pred_check_branch
      %14 = sbr.rel (0) target = $region9
    $region8: #{tpu_custom_call.1} parent=1 // pred_region
      _
    $region9: #{tpu_custom_call.1} parent=1 // pred_fallthru
      _
    // Predicated region
    $region10: #{tpu_custom_call.1} parent=1 // pred_check
      _
    $region11: #{tpu_custom_call.1} parent=1 // pred_check_branch
      %16 = sbr.rel (0) target = $region13
    $region12: #{tpu_custom_call.1} parent=1 // pred_region
      _
    $region13: #{tpu_custom_call.1} parent=1 // pred_fallthru
      _
    // Predicated region
    $region14: #{tpu_custom_call.1} parent=1 // pred_check
      _
    $region15: #{tpu_custom_call.1} parent=1 // pred_check_branch
      %18 = sbr.rel (0) target = $region17
    $region16: #{tpu_custom_call.1} parent=1 // pred_region
      _
    $region17: #{tpu_custom_call.1} parent=1 // pred_fallthru
      _
    // Predicated region
    $region18: #{tpu_custom_call.1} parent=1 // pred_check
      _
    $region19: #{tpu_custom_call.1} parent=1 // pred_check_branch
      %20 = sbr.rel (0) target = $region21
    $region20: #{tpu_custom_call.1} parent=1 // pred_region
      _
    $region21: #{tpu_custom_call.1} parent=1 // pred_fallthru
      _
    %v21 = vld [vmem:[%s0] sm:$0xff]
    %v22 = vld [vmem:[%s0 + $0x8] sm:$0xff]
    %v23 = vld [vmem:[%s0 + $0x10] sm:$0xff]
    %v24 = vld [vmem:[%s0 + $0x18] sm:$0xff]
    %v25 = vld [vmem:[%s0 + $0x20] sm:$0xff]
    %v26 = vld [vmem:[%s0 + $0x28] sm:$0xff]
    %v27 = vld [vmem:[%s0 + $0x30] sm:$0xff]
    %v28 = vld [vmem:[%s0 + $0x38] sm:$0xff]
    %v29 = vld [vmem:[%s0 + $0x40] sm:$0xff]
    %v30 = vld [vmem:[%s0 + $0x48] sm:$0xff]
    %v31 = vld [vmem:[%s0 + $0x50] sm:$0xff]
    %v32 = vld [vmem:[%s0 + $0x58] sm:$0xff]
    %v33 = vld [vmem:[%s0 + $0x60] sm:$0xff]
    %v34 = vld [vmem:[%s0 + $0x68] sm:$0xff]
    %v35 = vld [vmem:[%s0 + $0x70] sm:$0xff]
    %v36 = vld [vmem:[%s0 + $0x78] sm:$0xff]
    %v37 = vld [vmem:[%s0 + $0x80] sm:$0xff]
    %v38 = vld [vmem:[%s0 + $0x88] sm:$0xff]
    %v39 = vld [vmem:[%s0 + $0x90] sm:$0xff]
    %v40 = vld [vmem:[%s0 + $0x98] sm:$0xff]
    %v41 = vld [vmem:[%s1] sm:$0xff]
    %v42 = vld [vmem:[%s1 + $0x8] sm:$0xff]
    %v43 = vld [vmem:[%s1 + $0x10] sm:$0xff]
    %v44 = vld [vmem:[%s1 + $0x18] sm:$0xff]
    %v45 = vld [vmem:[%s1 + $0x20] sm:$0xff]
    %v46 = vld [vmem:[%s1 + $0x28] sm:$0xff]
    %v47 = vld [vmem:[%s1 + $0x30] sm:$0xff]
    %v48 = vld [vmem:[%s1 + $0x38] sm:$0xff]
    %v49 = vld [vmem:[%s2] sm:$0x1]
    %v51 = vlaneseq
    %v52 = vshrl.u32 %v51, 7
    %v53 = vsub.s32 0, %v52
    %v54 = vrot.slane %v49, %v53
    %vm56 = vcmask 523264
    %v58 = vsel %vm56, %v21, 0
    %v61 = vsel %vm56, %v22, 0
    %v64 = vsel %vm56, %v23, 0
    %v67 = vsel %vm56, %v24, 0
    %v70 = vsel %vm56, %v25, 0
    %v73 = vsel %vm56, %v26, 0
    %v76 = vsel %vm56, %v27, 0
    %v79 = vsel %vm56, %v28, 0
    %v82 = vsel %vm56, %v29, 0
    %v85 = vsel %vm56, %v30, 0
    %v88 = vsel %vm56, %v31, 0
    %v91 = vsel %vm56, %v32, 0
    %v94 = vsel %vm56, %v33, 0
    %v97 = vsel %vm56, %v34, 0
    %v100 = vsel %vm56, %v35, 0
    %v103 = vsel %vm56, %v36, 0
    %v106 = vsel %vm56, %v37, 0
    %v109 = vsel %vm56, %v38, 0
    %v112 = vsel %vm56, %v39, 0
    %v115 = vsel %vm56, %v40, 0
    %117 = vmatprep.subr.mxu0 0.0
    %118 = vmatpush1.msra.mxu0 %v41
    %119 = vmatprep.subr.mxu0 0.0
    %120 = vmatpush1.msra.mxu0 %v42
    %121 = vmatprep.subr.mxu0 0.0
    %122 = vmatpush1.msra.mxu0 %v43
    %123 = vmatprep.subr.mxu0 0.0
    %124 = vmatpush1.msra.mxu0 %v44
    %125 = vmatprep.subr.mxu0 0.0
    %126 = vmatpush1.msra.mxu0 %v45
    %127 = vmatprep.subr.mxu0 0.0
    %128 = vmatpush1.msra.mxu0 %v46
    %129 = vmatprep.subr.mxu0 0.0
    %130 = vmatpush1.msra.mxu0 %v47
    %131 = vmatprep.subr.mxu0 0.0
    %132 = vmatpush1.msra.mxu0 %v48
    %133 = vmatprep.subr.mxu0 0.0
    %134 = vmatpush1.msra.mxu0 0.0
    %135 = vmatprep.subr.mxu0 0.0
    %136 = vmatpush1.msra.mxu0 0.0
    %137 = vmatprep.subr.mxu0 0.0
    %138 = vmatpush1.msra.mxu0 0.0
    %139 = vmatprep.subr.mxu0 0.0
    %140 = vmatpush1.msra.mxu0 0.0
    %141 = vmatprep.subr.mxu0 0.0
    %142 = vmatpush1.msra.mxu0 0.0
    %143 = vmatprep.subr.mxu0 0.0
    %144 = vmatpush1.msra.mxu0 0.0
    %145 = vmatprep.subr.mxu0 0.0
    %146 = vmatpush1.msra.mxu0 0.0
    %147 = vmatprep.subr.mxu0 0.0
    %148 = vmatpush1.msra.mxu0 0.0
    %149 = vmatprep.subr.mxu0 0.0
    %150 = vmatpush1.msra.mxu0 0.0
    %151 = vmatprep.subr.mxu0 0.0
    %152 = vmatpush1.msra.mxu0 0.0
    %153 = vmatprep.subr.mxu0 0.0
    %154 = vmatpush1.msra.mxu0 0.0
    %155 = vmatprep.subr.mxu0 0.0
    %156 = vmatpush1.msra.mxu0 0.0
    %157 = vmatprep.subr.mxu0 0.0
    %158 = vmatpush1.msra.mxu0 0.0
    %159 = vmatprep.subr.mxu0 0.0
    %160 = vmatpush1.msra.mxu0 0.0
    %161 = vmatprep.subr.mxu0 0.0
    %162 = vmatpush1.msra.mxu0 0.0
    %163 = vmatprep.subr.mxu0 0.0
    %164 = vmatpush1.msra.mxu0 0.0
    %165 = vmatprep.subr.mxu0 0.0
    %166 = vmatpush1.msra.mxu0 0.0
    %167 = vmatprep.subr.mxu0 0.0
    %168 = vmatpush1.msra.mxu0 0.0
    %169 = vmatprep.subr.mxu0 0.0
    %170 = vmatpush1.msra.mxu0 0.0
    %171 = vmatprep.subr.mxu0 0.0
    %172 = vmatpush1.msra.mxu0 0.0
    %173 = vmatprep.subr.mxu0 0.0
    %174 = vmatpush1.msra.mxu0 0.0
    %175 = vmatprep.subr.mxu0 0.0
    %176 = vmatpush1.msra.mxu0 0.0
    %177 = vmatprep.subr.mxu0 0.0
    %178 = vmatpush1.msra.mxu0 0.0
    %179 = vmatprep.subr.mxu0 0.0
    %180 = vmatpush1.msra.mxu0 0.0
    %181 = vmatprep.mubr.f32.mxu0 0.0
    %182 = vmatmul.mubr.f32.gmra.mrb[0].mxu0 %v58
    %v183 = vpop.f32.mrb[0].mxu0
    %v184 = vadd.f32 %v54, %v183
    %v185 = vpop.f32.mrb[0].mxu0
    %186 = vmatprep.mubr.f32.mxu0 0.0
    %187 = vmatmul.mubr.f32.gmra.mrb[0].mxu0 %v61
    %v188 = vpop.f32.mrb[0].mxu0
    %v189 = vadd.f32 %v54, %v188
    %v190 = vpop.f32.mrb[0].mxu0
    %191 = vmatprep.mubr.f32.mxu0 0.0
    %192 = vmatmul.mubr.f32.gmra.mrb[0].mxu0 %v64
    %v193 = vpop.f32.mrb[0].mxu0
    %v194 = vadd.f32 %v54, %v193
    %v195 = vpop.f32.mrb[0].mxu0
    %196 = vmatprep.mubr.f32.mxu0 0.0
    %197 = vmatmul.mubr.f32.gmra.mrb[0].mxu0 %v67
    %v198 = vpop.f32.mrb[0].mxu0
    %v199 = vadd.f32 %v54, %v198
    %v200 = vpop.f32.mrb[0].mxu0
    %201 = vmatprep.mubr.f32.mxu0 0.0
    %202 = vmatmul.mubr.f32.gmra.mrb[0].mxu0 %v70
    %v203 = vpop.f32.mrb[0].mxu0
    %v204 = vadd.f32 %v54, %v203
    %v205 = vpop.f32.mrb[0].mxu0
    %206 = vmatprep.mubr.f32.mxu0 0.0
    %207 = vmatmul.mubr.f32.gmra.mrb[0].mxu0 %v73
    %v208 = vpop.f32.mrb[0].mxu0
    %v209 = vadd.f32 %v54, %v208
    %v210 = vpop.f32.mrb[0].mxu0
    %211 = vmatprep.mubr.f32.mxu0 0.0
    %212 = vmatmul.mubr.f32.gmra.mrb[0].mxu0 %v76
    %v213 = vpop.f32.mrb[0].mxu0
    %v214 = vadd.f32 %v54, %v213
    %v215 = vpop.f32.mrb[0].mxu0
    %216 = vmatprep.mubr.f32.mxu0 0.0
    %217 = vmatmul.mubr.f32.gmra.mrb[0].mxu0 %v79
    %v218 = vpop.f32.mrb[0].mxu0
    %v219 = vadd.f32 %v54, %v218
    %v220 = vpop.f32.mrb[0].mxu0
    %221 = vmatprep.mubr.f32.mxu0 0.0
    %222 = vmatmul.mubr.f32.gmra.mrb[0].mxu0 %v82
    %v223 = vpop.f32.mrb[0].mxu0
    %v224 = vadd.f32 %v54, %v223
    %v225 = vpop.f32.mrb[0].mxu0
    %226 = vmatprep.mubr.f32.mxu0 0.0
    %227 = vmatmul.mubr.f32.gmra.mrb[0].mxu0 %v85
    %v228 = vpop.f32.mrb[0].mxu0
    %v229 = vadd.f32 %v54, %v228
    %v230 = vpop.f32.mrb[0].mxu0
    %231 = vmatprep.mubr.f32.mxu0 0.0
    %232 = vmatmul.mubr.f32.gmra.mrb[0].mxu0 %v88
    %v233 = vpop.f32.mrb[0].mxu0
    %v234 = vadd.f32 %v54, %v233
    %v235 = vpop.f32.mrb[0].mxu0
    %236 = vmatprep.mubr.f32.mxu0 0.0
    %237 = vmatmul.mubr.f32.gmra.mrb[0].mxu0 %v91
    %v238 = vpop.f32.mrb[0].mxu0
    %v239 = vadd.f32 %v54, %v238
    %v240 = vpop.f32.mrb[0].mxu0
    %241 = vmatprep.mubr.f32.mxu0 0.0
    %242 = vmatmul.mubr.f32.gmra.mrb[0].mxu0 %v94
    %v243 = vpop.f32.mrb[0].mxu0
    %v244 = vadd.f32 %v54, %v243
    %v245 = vpop.f32.mrb[0].mxu0
    %246 = vmatprep.mubr.f32.mxu0 0.0
    %247 = vmatmul.mubr.f32.gmra.mrb[0].mxu0 %v97
    %v248 = vpop.f32.mrb[0].mxu0
    %v249 = vadd.f32 %v54, %v248
    %v250 = vpop.f32.mrb[0].mxu0
    %251 = vmatprep.mubr.f32.mxu0 0.0
    %252 = vmatmul.mubr.f32.gmra.mrb[0].mxu0 %v100
    %v253 = vpop.f32.mrb[0].mxu0
    %v254 = vadd.f32 %v54, %v253
    %v255 = vpop.f32.mrb[0].mxu0
    %256 = vmatprep.mubr.f32.mxu0 0.0
    %257 = vmatmul.mubr.f32.gmra.mrb[0].mxu0 %v103
    %v258 = vpop.f32.mrb[0].mxu0
    %v259 = vadd.f32 %v54, %v258
    %v260 = vpop.f32.mrb[0].mxu0
    %261 = vmatprep.mubr.f32.mxu0 0.0
    %262 = vmatmul.mubr.f32.gmra.mrb[0].mxu0 %v106
    %v263 = vpop.f32.mrb[0].mxu0
    %v264 = vadd.f32 %v54, %v263
    %v265 = vpop.f32.mrb[0].mxu0
    %266 = vmatprep.mubr.f32.mxu0 0.0
    %267 = vmatmul.mubr.f32.gmra.mrb[0].mxu0 %v109
    %v268 = vpop.f32.mrb[0].mxu0
    %v269 = vadd.f32 %v54, %v268
    %v270 = vpop.f32.mrb[0].mxu0
    %271 = vmatprep.mubr.f32.mxu0 0.0
    %272 = vmatmul.mubr.f32.gmra.mrb[0].mxu0 %v112
    %v273 = vpop.f32.mrb[0].mxu0
    %v274 = vadd.f32 %v54, %v273
    %v275 = vpop.f32.mrb[0].mxu0
    %276 = vmatprep.mubr.f32.mxu0 0.0
    %277 = vmatmul.mubr.f32.gmra.mrb[0].mxu0 %v115
    %v278 = vpop.f32.mrb[0].mxu0
    %v279 = vadd.f32 %v54, %v278
    %v280 = vpop.f32.mrb[0].mxu0
    %281 = vdwg.mxu0
    %v282 = vadd.f32 %v184, %v189
    %v283 = vadd.f32 %v282, %v194
    %v284 = vadd.f32 %v283, %v199
    %v285 = vadd.f32 %v284, %v204
    %v286 = vadd.f32 %v285, %v209
    %v287 = vadd.f32 %v286, %v214
    %v288 = vadd.f32 %v287, %v219
    %v289 = vadd.f32 %v288, %v224
    %v290 = vadd.f32 %v289, %v229
    %v291 = vadd.f32 %v290, %v234
    %v292 = vadd.f32 %v291, %v239
    %v293 = vadd.f32 %v292, %v244
    %v294 = vadd.f32 %v293, %v249
    %v295 = vadd.f32 %v294, %v254
    %v296 = vadd.f32 %v295, %v259
    %v297 = vadd.f32 %v296, %v264
    %v298 = vadd.f32 %v297, %v269
    %v299 = vadd.f32 %v298, %v274
    %v300 = vadd.f32 %v299, %v279
    %v301 = vrot.slane %v300, 4
    %v302 = vadd.f32 %v300, %v301
    %v303 = vrot.slane %v302, 2
    %v304 = vadd.f32 %v302, %v303
    %v305 = vrot.slane %v304, 1
    %v306 = vadd.f32 %v304, %v305
    %v307 = vrcp.pop 160.0
    %v308 = vmul.f32 %v306, %v307
    %v309 = vsub.f32 %v184, %v308
    %v310 = vsub.f32 %v189, %v308
    %v311 = vsub.f32 %v194, %v308
    %v312 = vsub.f32 %v199, %v308
    %v313 = vsub.f32 %v204, %v308
    %v314 = vsub.f32 %v209, %v308
    %v315 = vsub.f32 %v214, %v308
    %v316 = vsub.f32 %v219, %v308
    %v317 = vsub.f32 %v224, %v308
    %v318 = vsub.f32 %v229, %v308
    %v319 = vsub.f32 %v234, %v308
    %v320 = vsub.f32 %v239, %v308
    %v321 = vsub.f32 %v244, %v308
    %v322 = vsub.f32 %v249, %v308
    %v323 = vsub.f32 %v254, %v308
    %v324 = vsub.f32 %v259, %v308
    %v325 = vsub.f32 %v264, %v308
    %v326 = vsub.f32 %v269, %v308
    %v327 = vsub.f32 %v274, %v308
    %v328 = vsub.f32 %v279, %v308
    %v329 = vmul.f32 %v309, %v309
    %v330 = vmul.f32 %v310, %v310
    %v331 = vmul.f32 %v311, %v311
    %v332 = vmul.f32 %v312, %v312
    %v333 = vmul.f32 %v313, %v313
    %v334 = vmul.f32 %v314, %v314
    %v335 = vmul.f32 %v315, %v315
    %v336 = vmul.f32 %v316, %v316
    %v337 = vmul.f32 %v317, %v317
    %v338 = vmul.f32 %v318, %v318
    %v339 = vmul.f32 %v319, %v319
    %v340 = vmul.f32 %v320, %v320
    %v341 = vmul.f32 %v321, %v321
    %v342 = vmul.f32 %v322, %v322
    %v343 = vmul.f32 %v323, %v323
    %v344 = vmul.f32 %v324, %v324
    %v345 = vmul.f32 %v325, %v325
    %v346 = vmul.f32 %v326, %v326
    %v347 = vmul.f32 %v327, %v327
    %v348 = vmul.f32 %v328, %v328
    %v349 = vadd.f32 %v329, %v330
    %v350 = vadd.f32 %v349, %v331
    %v351 = vadd.f32 %v350, %v332
    %v352 = vadd.f32 %v351, %v333
    %v353 = vadd.f32 %v352, %v334
    %v354 = vadd.f32 %v353, %v335
    %v355 = vadd.f32 %v354, %v336
    %v356 = vadd.f32 %v355, %v337
    %v357 = vadd.f32 %v356, %v338
    %v358 = vadd.f32 %v357, %v339
    %v359 = vadd.f32 %v358, %v340
    %v360 = vadd.f32 %v359, %v341
    %v361 = vadd.f32 %v360, %v342
    %v362 = vadd.f32 %v361, %v343
    %v363 = vadd.f32 %v362, %v344
    %v364 = vadd.f32 %v363, %v345
    %v365 = vadd.f32 %v364, %v346
    %v366 = vadd.f32 %v365, %v347
    %v367 = vadd.f32 %v366, %v348
    %v368 = vrot.slane %v367, 4
    %v369 = vadd.f32 %v367, %v368
    %v370 = vrot.slane %v369, 2
    %v371 = vadd.f32 %v369, %v370
    %v372 = vrot.slane %v371, 1
    %v373 = vadd.f32 %v371, %v372
    %v374 = vmul.f32 %v373, %v307
    %v375 = vadd.f32 %v374, 1e-05
    %v376 = vrsqrt.pop %v375
    %v377 = vmul.f32 %v309, %v376
    %v378 = vmul.f32 %v310, %v376
    %v379 = vmul.f32 %v311, %v376
    %v380 = vmul.f32 %v312, %v376
    %v381 = vmul.f32 %v313, %v376
    %v382 = vmul.f32 %v314, %v376
    %v383 = vmul.f32 %v315, %v376
    %v384 = vmul.f32 %v316, %v376
    %v385 = vmul.f32 %v317, %v376
    %v386 = vmul.f32 %v318, %v376
    %v387 = vmul.f32 %v319, %v376
    %v388 = vmul.f32 %v320, %v376
    %v389 = vmul.f32 %v321, %v376
    %v390 = vmul.f32 %v322, %v376
    %v391 = vmul.f32 %v323, %v376
    %v392 = vmul.f32 %v324, %v376
    %v393 = vmul.f32 %v325, %v376
    %v394 = vmul.f32 %v326, %v376
    %v395 = vmul.f32 %v327, %v376
    %v396 = vmul.f32 %v328, %v376
    %v397 = vld [vmem:[%s3] sm:$0x1]
    %v399 = vlaneseq
    %v400 = vshrl.u32 %v399, 7
    %v401 = vsub.s32 0, %v400
    %v402 = vrot.slane %v397, %v401
    %v404 = vmul.f32 %v377, %v402
    %v405 = vmul.f32 %v378, %v402
    %v406 = vmul.f32 %v379, %v402
    %v407 = vmul.f32 %v380, %v402
    %v408 = vmul.f32 %v381, %v402
    %v409 = vmul.f32 %v382, %v402
    %v410 = vmul.f32 %v383, %v402
    %v411 = vmul.f32 %v384, %v402
    %v412 = vmul.f32 %v385, %v402
    %v413 = vmul.f32 %v386, %v402
    %v414 = vmul.f32 %v387, %v402
    %v415 = vmul.f32 %v388, %v402
    %v416 = vmul.f32 %v389, %v402
    %v417 = vmul.f32 %v390, %v402
    %v418 = vmul.f32 %v391, %v402
    %v419 = vmul.f32 %v392, %v402
    %v420 = vmul.f32 %v393, %v402
    %v421 = vmul.f32 %v394, %v402
    %v422 = vmul.f32 %v395, %v402
    %v423 = vmul.f32 %v396, %v402
    %v424 = vld [vmem:[%s4] sm:$0x1]
    %v426 = vlaneseq
    %v427 = vshrl.u32 %v426, 7
    %v428 = vsub.s32 0, %v427
    %v429 = vrot.slane %v424, %v428
    %v431 = vadd.f32 %v404, %v429
    %v432 = vadd.f32 %v405, %v429
    %v433 = vadd.f32 %v406, %v429
    %v434 = vadd.f32 %v407, %v429
    %v435 = vadd.f32 %v408, %v429
    %v436 = vadd.f32 %v409, %v429
    %v437 = vadd.f32 %v410, %v429
    %v438 = vadd.f32 %v411, %v429
    %v439 = vadd.f32 %v412, %v429
    %v440 = vadd.f32 %v413, %v429
    %v441 = vadd.f32 %v414, %v429
    %v442 = vadd.f32 %v415, %v429
    %v443 = vadd.f32 %v416, %v429
    %v444 = vadd.f32 %v417, %v429
    %v445 = vadd.f32 %v418, %v429
    %v446 = vadd.f32 %v419, %v429
    %v447 = vadd.f32 %v420, %v429
    %v448 = vadd.f32 %v421, %v429
    %v449 = vadd.f32 %v422, %v429
    %v450 = vadd.f32 %v423, %v429
    %v451 = vmax.f32 %v431, 0.0
    %v452 = vmax.f32 %v432, 0.0
    %v453 = vmax.f32 %v433, 0.0
    %v454 = vmax.f32 %v434, 0.0
    %v455 = vmax.f32 %v435, 0.0
    %v456 = vmax.f32 %v436, 0.0
    %v457 = vmax.f32 %v437, 0.0
    %v458 = vmax.f32 %v438, 0.0
    %v459 = vmax.f32 %v439, 0.0
    %v460 = vmax.f32 %v440, 0.0
    %v461 = vmax.f32 %v441, 0.0
    %v462 = vmax.f32 %v442, 0.0
    %v463 = vmax.f32 %v443, 0.0
    %v464 = vmax.f32 %v444, 0.0
    %v465 = vmax.f32 %v445, 0.0
    %v466 = vmax.f32 %v446, 0.0
    %v467 = vmax.f32 %v447, 0.0
    %v468 = vmax.f32 %v448, 0.0
    %v469 = vmax.f32 %v449, 0.0
    %v470 = vmax.f32 %v450, 0.0
    %471 = vst [vmem:[#allocation2] sm:$0xff] %v451
    %472 = vst [vmem:[#allocation2 + $0x8] sm:$0xff] %v452
    %473 = vst [vmem:[#allocation2 + $0x10] sm:$0xff] %v453
    %474 = vst [vmem:[#allocation2 + $0x18] sm:$0xff] %v454
    %475 = vst [vmem:[#allocation2 + $0x20] sm:$0xff] %v455
    %476 = vst [vmem:[#allocation2 + $0x28] sm:$0xff] %v456
    %477 = vst [vmem:[#allocation2 + $0x30] sm:$0xff] %v457
    %478 = vst [vmem:[#allocation2 + $0x38] sm:$0xff] %v458
    %479 = vst [vmem:[#allocation2 + $0x40] sm:$0xff] %v459
    %480 = vst [vmem:[#allocation2 + $0x48] sm:$0xff] %v460
    %481 = vst [vmem:[#allocation2 + $0x50] sm:$0xff] %v461
    %482 = vst [vmem:[#allocation2 + $0x58] sm:$0xff] %v462
    %483 = vst [vmem:[#allocation2 + $0x60] sm:$0xff] %v463
    %484 = vst [vmem:[#allocation2 + $0x68] sm:$0xff] %v464
    %485 = vst [vmem:[#allocation2 + $0x70] sm:$0xff] %v465
    %486 = vst [vmem:[#allocation2 + $0x78] sm:$0xff] %v466
    %487 = vst [vmem:[#allocation2 + $0x80] sm:$0xff] %v467
    %488 = vst [vmem:[#allocation2 + $0x88] sm:$0xff] %v468
    %489 = vst [vmem:[#allocation2 + $0x90] sm:$0xff] %v469
    %490 = vst [vmem:[#allocation2 + $0x98] sm:$0xff] %v470
    // Predicated region
    $region22: #{tpu_custom_call.1} parent=1 // pred_check
      _
    $region23: #{tpu_custom_call.1} parent=1 // pred_check_branch
      %492 = sbr.rel (0) target = $region25
    $region24: #{tpu_custom_call.1} parent=1 // pred_region
      %s494 = ssub.s32 2560, 2560
      %495 = vsyncadd [#allocation3], %s494
      %s496 = sshll.u32 [#allocation2], 4
      %s497 = int_to_ptr.vmem [resolvable:$true] %s496
      %502 = dma.vmem_to_hbm [thread:$0]  %s497, 2560, %s5, [#allocation3], 128, 128, 8
    $region25: #{tpu_custom_call.1} parent=1 // pred_fallthru
      _
    // Predicated region
    $region26: #{tpu_custom_call.1} parent=1 // pred_check
      _
    $region27: #{tpu_custom_call.1} parent=1 // pred_check_branch
      %504 = sbr.rel (0) target = $region29
    $region28: #{tpu_custom_call.1} parent=1 // pred_region
      %505 = dma.done [#allocation3], 2560
    $region29: #{tpu_custom_call.1} parent=1 // pred_fallthru
      _
    %506 = vsyncpa [#allocation3], 1

</llo_original>
